<compile_context>
chip_gen: v6e
topology: v6e:2x2x1
jax: 0.10.0
libtpu: 0.0.40
codegen_flags: <defaults>
</compile_context>

<pallas_src>
import jax
import jax.numpy as jnp
import numpy as np
from jax.experimental import pallas as pl
from jax.experimental.pallas import tpu as pltpu

LANE = 128          # padded hidden width (vreg lane width)
OUT_W = 8           # narrow padded output width written to HBM (real head = col 0)
MAX_TILE_B = 8192   # max batch-tile rows (see VMEM budget in header comment)
MIN_SPLIT_B = 1024  # above this, force >=2 grid steps so v7x uses both TCs
VMEM_LIMIT_BYTES = 32 * 1024 * 1024


def _round_up(x, m):
    return (x + m - 1) // m * m


def _cdiv(a, b):
    return (a + b - 1) // b


def _mlp_kernel(x_ref, w1_ref, w2_ref, wo_ref, b_ref, out_ref):
    # b_ref rows: 0 -> b1', 1 -> b2', 2 -> bo' (pre-folded, zero-padded).
    b1 = b_ref[0:1, :]
    b2 = b_ref[1:2, :]
    bo = b_ref[2:3, 0:OUT_W]

    h = jnp.dot(x_ref[...], w1_ref[...], preferred_element_type=jnp.float32) + b1
    h = jnp.clip(h, 0.0, 6.0)                                   # ReLU6
    h = jnp.dot(h, w2_ref[...], preferred_element_type=jnp.float32) + b2
    h = jnp.clip(h, 0.0, 6.0)                                   # ReLU6
    # Narrow store: only OUT_W lanes go back to HBM (real head in column 0).
    out_ref[...] = (jnp.dot(h, wo_ref[...], preferred_element_type=jnp.float32)
                    + bo)


def fold_bn(gamma, beta, mean, var, eps=1e-5):
    scale = gamma / jnp.sqrt(var + eps)
    shift = beta - mean * scale
    return scale, shift


def fold_params(feat_scale, feat_shift, w1, b1, s1, t1, w2, b2, s2, t2, wo, bo):
    """Fold the per-input-feature affine and both post-ReLU6 BatchNorm affines
    into the adjacent Linear layers (host-side algebra, zero kernel cost)."""
    fs = feat_scale.reshape(-1)
    ft = feat_shift.reshape(-1)
    w1f = fs[:, None] * w1
    b1f = b1.reshape(1, -1) + ft.reshape(1, -1) @ w1
    w2f = s1.reshape(-1)[:, None] * w2
    b2f = b2.reshape(1, -1) + t1.reshape(1, -1) @ w2
    wof = s2.reshape(-1)[:, None] * wo
    bof = bo.reshape(1, -1) + t2.reshape(1, -1) @ wo
    return w1f, b1f, w2f, b2f, wof, bof


def pad_params(w1f, b1f, w2f, b2f, wof, bof):
    """Zero-pad hidden dims to 128 lanes, keep the output head NARROW (OUT_W
    columns, real scalar in column 0), and pack all biases into one (8, 128)
    array (single DMA, one vreg tile)."""
    d_in, hidden = w1f.shape
    n_out = wof.shape[1]
    assert n_out <= OUT_W
    w1p = jnp.zeros((d_in, LANE), jnp.float32).at[:, :hidden].set(w1f)
    w2p = jnp.zeros((LANE, LANE), jnp.float32).at[:hidden, :hidden].set(w2f)
    wop = jnp.zeros((LANE, OUT_W), jnp.float32).at[:hidden, :n_out].set(wof)
    bias = jnp.zeros((8, LANE), jnp.float32)
    bias = bias.at[0, :hidden].set(b1f.reshape(-1))
    bias = bias.at[1, :hidden].set(b2f.reshape(-1))
    bias = bias.at[2, :n_out].set(bof.reshape(-1))
    return w1p, w2p, wop, bias


def _choose_tiling(B):
    """Even batch split: minimal padding, big tiles, >=2 steps for v7x."""
    b8 = _round_up(B, 8)
    n_tiles = _cdiv(b8, MAX_TILE_B)
    if n_tiles == 1 and b8 >= 2 * MIN_SPLIT_B:
        n_tiles = 2                      # give v7x's 2 TensorCores work
    elif n_tiles > 1:
        n_tiles = _round_up(n_tiles, 2)  # balanced across 2 TCs on v7x
    tile_b = _round_up(_cdiv(b8, n_tiles), 8)
    b_pad = n_tiles * tile_b
    return tile_b, b_pad


def run_mlp(x, w1p, w2p, wop, bias):
    B, d_in = x.shape
    tile_b, b_pad = _choose_tiling(B)
    if b_pad != B:
        x = jnp.pad(x, ((0, b_pad - B), (0, 0)))
    grid = (b_pad // tile_b,)

    out = pl.pallas_call(
        _mlp_kernel,
        out_shape=jax.ShapeDtypeStruct((b_pad, OUT_W), jnp.float32),
        grid=grid,
        in_specs=[
            pl.BlockSpec((tile_b, d_in), lambda i: (i, 0)),   # x: tiled over batch
            pl.BlockSpec((d_in, LANE), lambda i: (0, 0)),     # W1': resident
            pl.BlockSpec((LANE, LANE), lambda i: (0, 0)),     # W2': resident
            pl.BlockSpec((LANE, OUT_W), lambda i: (0, 0)),    # Wo' (narrow): resident
            pl.BlockSpec((8, LANE), lambda i: (0, 0)),        # packed biases
        ],
        out_specs=pl.BlockSpec((tile_b, OUT_W), lambda i: (i, 0)),  # narrow writeback
        compiler_params=pltpu.CompilerParams(
            dimension_semantics=("parallel",),                # 2-TC shard on v7x
            vmem_limit_bytes=VMEM_LIMIT_BYTES),               # 8192-row tiles on v5e too
    )(x, w1p, w2p, wop, bias)
    # Real scalar head lives in column 0; padded rows/columns are sliced off.
    return out[:B, :1]


if __name__ == "__main__":
    key = jax.random.PRNGKey(0)
    ks = iter(jax.random.split(key, 32))

    # ---- synthetic problem sizes (consistent with the module's __init__) ----
    batch = 8
    cat_dims = [10, 7, 5]                                   # 3 categorical vars
    emb_dims = [min(50, (c + 1) // 2) for c in cat_dims]    # [5, 4, 3]
    n_numeric = 6
    hidden = 32                                             # hidden_layer_size
    d_in = sum(emb_dims) + n_numeric                        # 18

    # ---- deterministic parameters ----
    emb_tables = [jax.random.normal(next(ks), (c, e), jnp.float32) * 0.1
                  for c, e in zip(cat_dims, emb_dims)]

    bn_num_scale, bn_num_shift = fold_bn(
        1.0 + 0.1 * jax.random.normal(next(ks), (n_numeric,), jnp.float32),
        0.1 * jax.random.normal(next(ks), (n_numeric,), jnp.float32),
        0.1 * jax.random.normal(next(ks), (n_numeric,), jnp.float32),
        0.5 + jax.random.uniform(next(ks), (n_numeric,), jnp.float32))

    def linear(k, fin, fout):
        k1, k2 = jax.random.split(k)
        lim = 1.0 / np.sqrt(fin)
        w = jax.random.uniform(k1, (fin, fout), jnp.float32, -lim, lim)
        b = jax.random.uniform(k2, (1, fout), jnp.float32, -lim, lim)
        return w, b

    w1, b1 = linear(next(ks), d_in, hidden)
    s1, t1 = fold_bn(1.0 + 0.1 * jax.random.normal(next(ks), (hidden,), jnp.float32),
                     0.1 * jax.random.normal(next(ks), (hidden,), jnp.float32),
                     0.1 * jax.random.normal(next(ks), (hidden,), jnp.float32),
                     0.5 + jax.random.uniform(next(ks), (hidden,), jnp.float32))
    w2, b2 = linear(next(ks), hidden, hidden)
    s2, t2 = fold_bn(1.0 + 0.1 * jax.random.normal(next(ks), (hidden,), jnp.float32),
                     0.1 * jax.random.normal(next(ks), (hidden,), jnp.float32),
                     0.1 * jax.random.normal(next(ks), (hidden,), jnp.float32),
                     0.5 + jax.random.uniform(next(ks), (hidden,), jnp.float32))
    wo, bo = linear(next(ks), hidden, 1)

    # ---- inputs ----
    Xc_list = [jax.random.randint(next(ks), (batch,), 0, c, jnp.int32)
               for c in cat_dims]
    Xn = jax.random.normal(next(ks), (batch, n_numeric), jnp.float32)

    # ---- JAX glue: embedding gather + concat (cat_dropout is identity in eval) ----
    Xc = jnp.concatenate([jnp.take(tbl, idx, axis=0)
                          for tbl, idx in zip(emb_tables, Xc_list)], axis=1)
    X = jnp.concatenate([Xc, Xn], axis=1)                       # (batch, d_in)

    feat_scale = jnp.concatenate([jnp.ones((sum(emb_dims),), jnp.float32),
                                  bn_num_scale])
    feat_shift = jnp.concatenate([jnp.zeros((sum(emb_dims),), jnp.float32),
                                  bn_num_shift])

    # ---- host-side folding + padding/packing, then the Pallas kernel ----
    folded = fold_params(feat_scale, feat_shift,
                         w1, b1, s1, t1, w2, b2, s2, t2, wo, bo)
    w1f, b1f, w2f, b2f, wof, bof = folded
    w1p, w2p, wop, bias = pad_params(*folded)

    out = jax.block_until_ready(run_mlp(X, w1p, w2p, wop, bias))
    assert out.shape == (batch, 1)

    # ---- check 1: kernel vs pure-JAX reference with the SAME folded op order ----
    def ref_folded(x):
        h = jnp.clip(x @ w1f + b1f, 0.0, 6.0)
        h = jnp.clip(h @ w2f + b2f, 0.0, 6.0)
        return h @ wof + bof

    ref = jax.block_until_ready(ref_folded(X))
    np.testing.assert_allclose(np.asarray(out), np.asarray(ref),
                               rtol=1e-5, atol=1e-5)

    # ---- check 2 (float64 on host): folding preserves the original module math ----
    def n64(a):
        return np.asarray(a, np.float64)

    X64 = n64(X)
    h = X64 * n64(feat_scale) + n64(feat_shift)
    h = np.clip(h @ n64(w1) + n64(b1), 0.0, 6.0) * n64(s1) + n64(t1)
    h = np.clip(h @ n64(w2) + n64(b2), 0.0, 6.0) * n64(s2) + n64(t2)
    ref_orig64 = h @ n64(wo) + n64(bo)

    h = np.clip(X64 @ n64(w1f) + n64(b1f), 0.0, 6.0)
    h = np.clip(h @ n64(w2f) + n64(b2f), 0.0, 6.0)
    ref_fold64 = h @ n64(wof) + n64(bof)
    np.testing.assert_allclose(ref_fold64, ref_orig64, rtol=1e-5, atol=1e-5)

    # ---- check 3: tiling logic exercises multi-step / even-split paths ----
    tb, bp = _choose_tiling(3000)
    assert bp % tb == 0 and bp // tb == 2          # >=2 steps for v7x
    tb, bp = _choose_tiling(1025)
    assert bp - 1025 < 8                            # no near-doubling padding

    print("KERNEL_OK")
</pallas_src>

<mosaic_0001>
module attributes {stable_mosaic.version = 11 : i64} {
  func.func @_mlp_kernel(%arg0: i32, %arg1: memref<8x18xf32, #tpu.memory_space<vmem>>, %arg2: memref<18x128xf32, #tpu.memory_space<vmem>>, %arg3: memref<128x128xf32, #tpu.memory_space<vmem>>, %arg4: memref<128x8xf32, #tpu.memory_space<vmem>>, %arg5: memref<8x128xf32, #tpu.memory_space<vmem>>, %arg6: memref<8x8xf32, #tpu.memory_space<vmem>>) attributes {dimension_semantics = [#tpu.dimension_semantics<parallel>], iteration_bounds = array<i64: 1>, scalar_prefetch = 0 : i64, scratch_operands = 0 : i64, tpu.core_type = #tpu.core_type<tc>, window_params = [{transform_indices = @transform_0, window_bounds = array<i64: 8, 18>}, {pipeline_mode = #tpu.pipeline_mode<synchronous>, transform_indices = @transform_1, window_bounds = array<i64: 18, 128>}, {pipeline_mode = #tpu.pipeline_mode<synchronous>, transform_indices = @transform_2, window_bounds = array<i64: 128, 128>}, {pipeline_mode = #tpu.pipeline_mode<synchronous>, transform_indices = @transform_3, window_bounds = array<i64: 128, 8>}, {pipeline_mode = #tpu.pipeline_mode<synchronous>, transform_indices = @transform_4, window_bounds = array<i64: 8, 128>}, {transform_indices = @transform_5, window_bounds = array<i64: 8, 8>}]} {
    %c0 = arith.constant 0 : index
    %c0_0 = arith.constant 0 : index
    %0 = vector.load %arg5[%c0, %c0_0] : memref<8x128xf32, #tpu.memory_space<vmem>>, vector<1x128xf32>
    %c1 = arith.constant 1 : index
    %c0_1 = arith.constant 0 : index
    %1 = vector.load %arg5[%c1, %c0_1] : memref<8x128xf32, #tpu.memory_space<vmem>>, vector<1x128xf32>
    %c2 = arith.constant 2 : index
    %c0_2 = arith.constant 0 : index
    %2 = vector.load %arg5[%c2, %c0_2] : memref<8x128xf32, #tpu.memory_space<vmem>>, vector<1x8xf32>
    %c0_3 = arith.constant 0 : index
    %c0_4 = arith.constant 0 : index
    %3 = vector.load %arg1[%c0_3, %c0_4] : memref<8x18xf32, #tpu.memory_space<vmem>>, vector<8x18xf32>
    %c0_5 = arith.constant 0 : index
    %c0_6 = arith.constant 0 : index
    %4 = vector.load %arg2[%c0_5, %c0_6] : memref<18x128xf32, #tpu.memory_space<vmem>>, vector<18x128xf32>
    %cst = arith.constant dense<0.000000e+00> : vector<8x128xf32>
    %5 = tpu.matmul %3, %4, %cst {dimension_numbers = #tpu.dot_dimension_numbers<[1], [0], [0], [1], [0, 0, 1, 1], [], []>} : vector<8x18xf32>, vector<18x128xf32>, vector<8x128xf32> -> vector<8x128xf32>
    %6 = vector.broadcast %0 : vector<1x128xf32> to vector<8x128xf32>
    %7 = arith.addf %5, %6 : vector<8x128xf32>
    %cst_7 = arith.constant 0.000000e+00 : f32
    %cst_8 = arith.constant 6.000000e+00 : f32
    %8 = vector.broadcast %cst_7 : f32 to vector<8x128xf32>
    %9 = arith.maximumf %8, %7 : vector<8x128xf32>
    %10 = vector.broadcast %cst_8 : f32 to vector<8x128xf32>
    %11 = arith.minimumf %10, %9 : vector<8x128xf32>
    %c0_9 = arith.constant 0 : index
    %c0_10 = arith.constant 0 : index
    %12 = vector.load %arg3[%c0_9, %c0_10] : memref<128x128xf32, #tpu.memory_space<vmem>>, vector<128x128xf32>
    %cst_11 = arith.constant dense<0.000000e+00> : vector<8x128xf32>
    %13 = tpu.matmul %11, %12, %cst_11 {dimension_numbers = #tpu.dot_dimension_numbers<[1], [0], [0], [1], [0, 0, 1, 1], [], []>} : vector<8x128xf32>, vector<128x128xf32>, vector<8x128xf32> -> vector<8x128xf32>
    %14 = vector.broadcast %1 : vector<1x128xf32> to vector<8x128xf32>
    %15 = arith.addf %13, %14 : vector<8x128xf32>
    %cst_12 = arith.constant 0.000000e+00 : f32
    %cst_13 = arith.constant 6.000000e+00 : f32
    %16 = vector.broadcast %cst_12 : f32 to vector<8x128xf32>
    %17 = arith.maximumf %16, %15 : vector<8x128xf32>
    %18 = vector.broadcast %cst_13 : f32 to vector<8x128xf32>
    %19 = arith.minimumf %18, %17 : vector<8x128xf32>
    %c0_14 = arith.constant 0 : index
    %c0_15 = arith.constant 0 : index
    %20 = vector.load %arg4[%c0_14, %c0_15] : memref<128x8xf32, #tpu.memory_space<vmem>>, vector<128x8xf32>
    %cst_16 = arith.constant dense<0.000000e+00> : vector<8x8xf32>
    %21 = tpu.matmul %19, %20, %cst_16 {dimension_numbers = #tpu.dot_dimension_numbers<[1], [0], [0], [1], [0, 0, 1, 1], [], []>} : vector<8x128xf32>, vector<128x8xf32>, vector<8x8xf32> -> vector<8x8xf32>
    %22 = vector.broadcast %2 : vector<1x8xf32> to vector<8x8xf32>
    %23 = arith.addf %21, %22 : vector<8x8xf32>
    %c0_17 = arith.constant 0 : index
    %c0_18 = arith.constant 0 : index
    %24 = vector.load %arg6[%c0_17, %c0_18] : memref<8x8xf32, #tpu.memory_space<vmem>>, vector<8x8xf32>
    tpu.vector_store %arg6[%c0_17, %c0_18], %23 {strides = array<i32>} : memref<8x8xf32, #tpu.memory_space<vmem>>, vector<8x8xf32>,
    return
  }
  func.func @transform_0(%arg0: i32) -> (i32, i32) {
    %c0_i32 = arith.constant 0 : i32
    %c0_i32_0 = arith.constant 0 : i32
    return %arg0, %c0_i32 : i32, i32
  }
  func.func @transform_1(%arg0: i32) -> (i32, i32) {
    %c0_i32 = arith.constant 0 : i32
    %c0_i32_0 = arith.constant 0 : i32
    %c0_i32_1 = arith.constant 0 : i32
    return %c0_i32, %c0_i32_0 : i32, i32
  }
  func.func @transform_2(%arg0: i32) -> (i32, i32) {
    %c0_i32 = arith.constant 0 : i32
    %c0_i32_0 = arith.constant 0 : i32
    %c0_i32_1 = arith.constant 0 : i32
    return %c0_i32, %c0_i32_0 : i32, i32
  }
  func.func @transform_3(%arg0: i32) -> (i32, i32) {
    %c0_i32 = arith.constant 0 : i32
    %c0_i32_0 = arith.constant 0 : i32
    %c0_i32_1 = arith.constant 0 : i32
    return %c0_i32, %c0_i32_0 : i32, i32
  }
  func.func @transform_4(%arg0: i32) -> (i32, i32) {
    %c0_i32 = arith.constant 0 : i32
    %c0_i32_0 = arith.constant 0 : i32
    %c0_i32_1 = arith.constant 0 : i32
    return %c0_i32, %c0_i32_0 : i32, i32
  }
  func.func @transform_5(%arg0: i32) -> (i32, i32) {
    %c0_i32 = arith.constant 0 : i32
    %c0_i32_0 = arith.constant 0 : i32
    return %arg0, %c0_i32 : i32, i32
  }
}

</mosaic_0001>

<llo_original>
// kernel: tpu_custom_call.1
$region0: #{tpu_custom_call.1}
  #allocation0 [shape = 'u32[]', space=smem, size = 0x4, offset = 0x4, fixed_abs, tag = 'smem constant byte address 0x4 - core index']
  #allocation1 [shape = 'u32[144,128]{1,0:T(1,128)}', space=vmem, size = 0x12000, scoped, tag = 'internal scratch']
  %s0 = inlined_call_operand.vmem [shape: f32[8,18], index: 0, kind: input, shape index: {}]
  %s1 = inlined_call_operand.hbm [shape: f32[18,128], index: 1, kind: input, shape index: {}]
  %s2 = inlined_call_operand.vmem [shape: f32[128,128], index: 2, kind: input, shape index: {}]
  %s3 = inlined_call_operand.vmem [shape: f32[128,8], index: 3, kind: input, shape index: {}]
  %s4 = inlined_call_operand.hbm [shape: f32[8,128], index: 4, kind: input, shape index: {}]
  %s5 = inlined_call_operand.hbm [shape: f32[8,8], index: 5, kind: output, shape index: {}]
  %s6 = sld [smem:[#allocation0]]
  $region38: #{tpu_custom_call.1} parent=0
    _
  %s8 = ssub.s32 1, %s6
  %s9 = scalar_select 0, %s8, %s6
  $region1: #{tpu_custom_call.1} parent=0
    #allocation2 [shape = 'u8[12288]{0}', space=vmem, size = 0x3000, scoped, tag = 'input window, operand 1, single buffered']
    #allocation3 [shape = 's32[1]{0}', space=sflag, size = 0x4, scoped, tag = 'scoped memory for tpu_custom_call.1']
    #allocation4 [shape = 's32[1]{0}', space=sflag, size = 0x4, scoped, tag = 'scoped memory for tpu_custom_call.1']
    #allocation5 [shape = 'u8[4096]{0}', space=vmem, size = 0x1000, scoped, tag = 'input window, operand 4, single buffered']
    #allocation6 [shape = 's32[1]{0}', space=sflag, size = 0x4, scoped, tag = 'scoped memory for tpu_custom_call.1']
    #allocation7 [shape = 'u8[4096]{0}', space=vmem, size = 0x1000, scoped, tag = 'output window, operand 0, single buffered']
    %10 = vsyncpa [#allocation3], 0
    %11 = vsyncpa [#allocation6], 0
    %12 = vsyncpa [#allocation4], 0
    // Predicated region
    $region2: #{tpu_custom_call.1} parent=1 // pred_check
      _
    $region3: #{tpu_custom_call.1} parent=1 // pred_check_branch
      %14 = sbr.rel (0) target = $region5
    $region4: #{tpu_custom_call.1} parent=1 // pred_region
      _
    $region5: #{tpu_custom_call.1} parent=1 // pred_fallthru
      _
    // Predicated region
    $region6: #{tpu_custom_call.1} parent=1 // pred_check
      _
    $region7: #{tpu_custom_call.1} parent=1 // pred_check_branch
      %16 = sbr.rel (0) target = $region9
    $region8: #{tpu_custom_call.1} parent=1 // pred_region
      %s18 = ssub.s32 384, 384
      %19 = vsyncadd [#allocation3], %s18
      %s20 = sshll.u32 [#allocation2], 4
      %s21 = int_to_ptr.vmem [resolvable:$true] %s20
      %26 = dma.hbm_to_vmem [thread:$0]  %s1, 384, %s21, [#allocation3], 128, 128, 8
    $region9: #{tpu_custom_call.1} parent=1 // pred_fallthru
      _
    // Predicated region
    $region10: #{tpu_custom_call.1} parent=1 // pred_check
      _
    $region11: #{tpu_custom_call.1} parent=1 // pred_check_branch
      %28 = sbr.rel (0) target = $region13
    $region12: #{tpu_custom_call.1} parent=1 // pred_region
      _
    $region13: #{tpu_custom_call.1} parent=1 // pred_fallthru
      _
    // Predicated region
    $region14: #{tpu_custom_call.1} parent=1 // pred_check
      _
    $region15: #{tpu_custom_call.1} parent=1 // pred_check_branch
      %30 = sbr.rel (0) target = $region17
    $region16: #{tpu_custom_call.1} parent=1 // pred_region
      _
    $region17: #{tpu_custom_call.1} parent=1 // pred_fallthru
      _
    // Predicated region
    $region18: #{tpu_custom_call.1} parent=1 // pred_check
      _
    $region19: #{tpu_custom_call.1} parent=1 // pred_check_branch
      %32 = sbr.rel (0) target = $region21
    $region20: #{tpu_custom_call.1} parent=1 // pred_region
      %s34 = ssub.s32 128, 128
      %35 = vsyncadd [#allocation6], %s34
      %s37 = sshll.u32 [#allocation5], 4
      %s38 = int_to_ptr.vmem [resolvable:$true] %s37
      %40 = dma.hbm_to_vmem [thread:$0]  %s4, 128, %s38, [#allocation6]
    $region21: #{tpu_custom_call.1} parent=1 // pred_fallthru
      _
    // Predicated region
    $region22: #{tpu_custom_call.1} parent=1 // pred_check
      _
    $region23: #{tpu_custom_call.1} parent=1 // pred_check_branch
      %42 = sbr.rel (0) target = $region25
    $region24: #{tpu_custom_call.1} parent=1 // pred_region
      %43 = dma.done [#allocation3], 384
    $region25: #{tpu_custom_call.1} parent=1 // pred_fallthru
      _
    // Predicated region
    $region26: #{tpu_custom_call.1} parent=1 // pred_check
      _
    $region27: #{tpu_custom_call.1} parent=1 // pred_check_branch
      %45 = sbr.rel (0) target = $region29
    $region28: #{tpu_custom_call.1} parent=1 // pred_region
      %46 = dma.done [#allocation6], 128
    $region29: #{tpu_custom_call.1} parent=1 // pred_fallthru
      _
    %v47 = vld [vmem:[#allocation5] sm:$0x1]
    %v48 = vld [vmem:[#allocation5 + $0x1] sm:$0x1]
    %v49 = vld [vmem:[#allocation5 + $0x2] sm:$0x1]
    %v50 = vld [vmem:[%s0] sm:$0xff]
    %v51 = vld [vmem:[#allocation2] sm:$0xff]
    %v52 = vld [vmem:[#allocation2 + $0x8] sm:$0xff]
    %v53 = vld [vmem:[#allocation2 + $0x10] sm:$0x3]
    %v54 = vlaneseq
    %v55 = vshrl.u32 %v54, 7
    %v56 = vsub.s32 0, %v55
    %v57 = vrot.slane %v47, %v56
    %vm58 = vcmask 146432
    %v60 = vsel %vm58, %v50, 0
    %vm62 = vcmask 1041408
    %v64 = vsel %vm62, %v53, 0
    %66 = vmatprep.subr.mxu0 0.0
    %67 = vmatpush1.msra.mxu0 0.0
    %68 = vmatprep.subr.mxu0 0.0
    %69 = vmatpush1.msra.mxu0 0.0
    %70 = vmatprep.subr.mxu0 0.0
    %71 = vmatpush1.msra.mxu0 0.0
    %72 = vmatprep.subr.mxu0 0.0
    %73 = vmatpush1.msra.mxu0 0.0
    %74 = vmatprep.subr.mxu0 0.0
    %75 = vmatpush1.msra.mxu0 0.0
    %76 = vmatprep.subr.mxu0 0.0
    %77 = vmatpush1.msra.mxu0 0.0
    %78 = vmatprep.subr.mxu0 0.0
    %79 = vmatpush1.msra.mxu0 0.0
    %80 = vmatprep.subr.mxu0 0.0
    %81 = vmatpush1.msra.mxu0 0.0
    %82 = vmatprep.subr.mxu0 0.0
    %83 = vmatpush1.msra.mxu0 0.0
    %84 = vmatprep.subr.mxu0 0.0
    %85 = vmatpush1.msra.mxu0 0.0
    %86 = vmatprep.subr.mxu0 0.0
    %87 = vmatpush1.msra.mxu0 0.0
    %88 = vmatprep.subr.mxu0 0.0
    %89 = vmatpush1.msra.mxu0 0.0
    %90 = vmatprep.subr.mxu0 0.0
    %91 = vmatpush1.msra.mxu0 0.0
    %92 = vmatprep.subr.mxu0 0.0
    %93 = vmatpush1.msra.mxu0 %v64
    %94 = vmatprep.subr.mxu0 0.0
    %95 = vmatpush1.msra.mxu0 %v52
    %96 = vmatprep.subr.mxu0 0.0
    %97 = vmatpush1.msra.mxu0 %v51
    %98 = vmatprep.subr.mxu0 0.0
    %99 = vmatpush2.msra.mxu0 0.0
    %100 = vmatprep.subr.mxu0 0.0
    %101 = vmatpush2.msra.mxu0 0.0
    %102 = vmatprep.subr.mxu0 0.0
    %103 = vmatpush2.msra.mxu0 0.0
    %104 = vmatprep.subr.mxu0 0.0
    %105 = vmatpush2.msra.mxu0 0.0
    %106 = vmatprep.subr.mxu0 0.0
    %107 = vmatpush2.msra.mxu0 0.0
    %108 = vmatprep.subr.mxu0 0.0
    %109 = vmatpush2.msra.mxu0 0.0
    %110 = vmatprep.subr.mxu0 0.0
    %111 = vmatpush2.msra.mxu0 0.0
    %112 = vmatprep.subr.mxu0 0.0
    %113 = vmatpush2.msra.mxu0 0.0
    %114 = vmatprep.subr.mxu0 0.0
    %115 = vmatpush2.msra.mxu0 0.0
    %116 = vmatprep.subr.mxu0 0.0
    %117 = vmatpush2.msra.mxu0 0.0
    %118 = vmatprep.subr.mxu0 0.0
    %119 = vmatpush2.msra.mxu0 0.0
    %120 = vmatprep.subr.mxu0 0.0
    %121 = vmatpush2.msra.mxu0 0.0
    %122 = vmatprep.subr.mxu0 0.0
    %123 = vmatpush2.msra.mxu0 0.0
    %124 = vmatprep.subr.mxu0 0.0
    %125 = vmatpush2.msra.mxu0 0.0
    %126 = vmatprep.subr.mxu0 0.0
    %127 = vmatpush2.msra.mxu0 0.0
    %128 = vmatprep.subr.mxu0 0.0
    %129 = vmatpush2.msra.mxu0 0.0
    %130 = vmatprep.mubr.f32.mxu0 0.0
    %131 = vmatmul.mubr.f32.gmra.mxu0 %v60
    %v132 = vpop.f32.mrf.mxu0
    %v133 = vadd.f32 %v57, %v132
    %v134 = vpop.f32.mrf.mxu0
    %135 = vdwg.mxu0
    %v136 = vmax.f32 %v133, 0.0
    %v137 = vmin.f32 %v136, 6.0
    %v138 = vld [vmem:[%s2] sm:$0xff]
    %v139 = vld [vmem:[%s2 + $0x8] sm:$0xff]
    %v140 = vld [vmem:[%s2 + $0x10] sm:$0xff]
    %v141 = vld [vmem:[%s2 + $0x18] sm:$0xff]
    %v142 = vld [vmem:[%s2 + $0x20] sm:$0xff]
    %v143 = vld [vmem:[%s2 + $0x28] sm:$0xff]
    %v144 = vld [vmem:[%s2 + $0x30] sm:$0xff]
    %v145 = vld [vmem:[%s2 + $0x38] sm:$0xff]
    %v146 = vld [vmem:[%s2 + $0x40] sm:$0xff]
    %v147 = vld [vmem:[%s2 + $0x48] sm:$0xff]
    %v148 = vld [vmem:[%s2 + $0x50] sm:$0xff]
    %v149 = vld [vmem:[%s2 + $0x58] sm:$0xff]
    %v150 = vld [vmem:[%s2 + $0x60] sm:$0xff]
    %v151 = vld [vmem:[%s2 + $0x68] sm:$0xff]
    %v152 = vld [vmem:[%s2 + $0x70] sm:$0xff]
    %v153 = vld [vmem:[%s2 + $0x78] sm:$0xff]
    %v154 = vlaneseq
    %v155 = vshrl.u32 %v154, 7
    %v156 = vsub.s32 0, %v155
    %v157 = vrot.slane %v48, %v156
    %158 = vmatprep.subr.mxu0 0.0
    %159 = vmatpush1.msra.mxu0 %v153
    %160 = vmatprep.subr.mxu0 0.0
    %161 = vmatpush1.msra.mxu0 %v152
    %162 = vmatprep.subr.mxu0 0.0
    %163 = vmatpush1.msra.mxu0 %v151
    %164 = vmatprep.subr.mxu0 0.0
    %165 = vmatpush1.msra.mxu0 %v150
    %166 = vmatprep.subr.mxu0 0.0
    %167 = vmatpush1.msra.mxu0 %v149
    %168 = vmatprep.subr.mxu0 0.0
    %169 = vmatpush1.msra.mxu0 %v148
    %170 = vmatprep.subr.mxu0 0.0
    %171 = vmatpush1.msra.mxu0 %v147
    %172 = vmatprep.subr.mxu0 0.0
    %173 = vmatpush1.msra.mxu0 %v146
    %174 = vmatprep.subr.mxu0 0.0
    %175 = vmatpush1.msra.mxu0 %v145
    %176 = vmatprep.subr.mxu0 0.0
    %177 = vmatpush1.msra.mxu0 %v144
    %178 = vmatprep.subr.mxu0 0.0
    %179 = vmatpush1.msra.mxu0 %v143
    %180 = vmatprep.subr.mxu0 0.0
    %181 = vmatpush1.msra.mxu0 %v142
    %182 = vmatprep.subr.mxu0 0.0
    %183 = vmatpush1.msra.mxu0 %v141
    %184 = vmatprep.subr.mxu0 0.0
    %185 = vmatpush1.msra.mxu0 %v140
    %186 = vmatprep.subr.mxu0 0.0
    %187 = vmatpush1.msra.mxu0 %v139
    %188 = vmatprep.subr.mxu0 0.0
    %189 = vmatpush1.msra.mxu0 %v138
    %190 = vmatprep.subr.mxu0 0.0
    %191 = vmatpush2.msra.mxu0 0.0
    %192 = vmatprep.subr.mxu0 0.0
    %193 = vmatpush2.msra.mxu0 0.0
    %194 = vmatprep.subr.mxu0 0.0
    %195 = vmatpush2.msra.mxu0 0.0
    %196 = vmatprep.subr.mxu0 0.0
    %197 = vmatpush2.msra.mxu0 0.0
    %198 = vmatprep.subr.mxu0 0.0
    %199 = vmatpush2.msra.mxu0 0.0
    %200 = vmatprep.subr.mxu0 0.0
    %201 = vmatpush2.msra.mxu0 0.0
    %202 = vmatprep.subr.mxu0 0.0
    %203 = vmatpush2.msra.mxu0 0.0
    %204 = vmatprep.subr.mxu0 0.0
    %205 = vmatpush2.msra.mxu0 0.0
    %206 = vmatprep.subr.mxu0 0.0
    %207 = vmatpush2.msra.mxu0 0.0
    %208 = vmatprep.subr.mxu0 0.0
    %209 = vmatpush2.msra.mxu0 0.0
    %210 = vmatprep.subr.mxu0 0.0
    %211 = vmatpush2.msra.mxu0 0.0
    %212 = vmatprep.subr.mxu0 0.0
    %213 = vmatpush2.msra.mxu0 0.0
    %214 = vmatprep.subr.mxu0 0.0
    %215 = vmatpush2.msra.mxu0 0.0
    %216 = vmatprep.subr.mxu0 0.0
    %217 = vmatpush2.msra.mxu0 0.0
    %218 = vmatprep.subr.mxu0 0.0
    %219 = vmatpush2.msra.mxu0 0.0
    %220 = vmatprep.subr.mxu0 0.0
    %221 = vmatpush2.msra.mxu0 0.0
    %222 = vmatprep.mubr.f32.mxu0 0.0
    %223 = vmatmul.mubr.f32.gmra.mxu0 %v137
    %v224 = vpop.f32.mrf.mxu0
    %v225 = vadd.f32 %v157, %v224
    %v226 = vpop.f32.mrf.mxu0
    %227 = vdwg.mxu0
    %v228 = vmax.f32 %v225, 0.0
    %v229 = vmin.f32 %v228, 6.0
    %v230 = vld [vmem:[%s3] sm:$0xff]
    %v231 = vld [vmem:[%s3 + $0x8] sm:$0xff]
    %v232 = vld [vmem:[%s3 + $0x10] sm:$0xff]
    %v233 = vld [vmem:[%s3 + $0x18] sm:$0xff]
    %v234 = vld [vmem:[%s3 + $0x20] sm:$0xff]
    %v235 = vld [vmem:[%s3 + $0x28] sm:$0xff]
    %v236 = vld [vmem:[%s3 + $0x30] sm:$0xff]
    %v237 = vld [vmem:[%s3 + $0x38] sm:$0xff]
    %v238 = vld [vmem:[%s3 + $0x40] sm:$0xff]
    %v239 = vld [vmem:[%s3 + $0x48] sm:$0xff]
    %v240 = vld [vmem:[%s3 + $0x50] sm:$0xff]
    %v241 = vld [vmem:[%s3 + $0x58] sm:$0xff]
    %v242 = vld [vmem:[%s3 + $0x60] sm:$0xff]
    %v243 = vld [vmem:[%s3 + $0x68] sm:$0xff]
    %v244 = vld [vmem:[%s3 + $0x70] sm:$0xff]
    %v245 = vld [vmem:[%s3 + $0x78] sm:$0xff]
    %v246 = vlaneseq
    %v247 = vshrl.u32 %v246, 7
    %v248 = vsub.s32 0, %v247
    %v249 = vrot.slane %v49, %v248
    %250 = vmatprep.subr.mxu0 0.0
    %251 = vmatpush1.msra.mxu0 %v245
    %252 = vmatprep.subr.mxu0 0.0
    %253 = vmatpush1.msra.mxu0 %v244
    %254 = vmatprep.subr.mxu0 0.0
    %255 = vmatpush1.msra.mxu0 %v243
    %256 = vmatprep.subr.mxu0 0.0
    %257 = vmatpush1.msra.mxu0 %v242
    %258 = vmatprep.subr.mxu0 0.0
    %259 = vmatpush1.msra.mxu0 %v241
    %260 = vmatprep.subr.mxu0 0.0
    %261 = vmatpush1.msra.mxu0 %v240
    %262 = vmatprep.subr.mxu0 0.0
    %263 = vmatpush1.msra.mxu0 %v239
    %264 = vmatprep.subr.mxu0 0.0
    %265 = vmatpush1.msra.mxu0 %v238
    %266 = vmatprep.subr.mxu0 0.0
    %267 = vmatpush1.msra.mxu0 %v237
    %268 = vmatprep.subr.mxu0 0.0
    %269 = vmatpush1.msra.mxu0 %v236
    %270 = vmatprep.subr.mxu0 0.0
    %271 = vmatpush1.msra.mxu0 %v235
    %272 = vmatprep.subr.mxu0 0.0
    %273 = vmatpush1.msra.mxu0 %v234
    %274 = vmatprep.subr.mxu0 0.0
    %275 = vmatpush1.msra.mxu0 %v233
    %276 = vmatprep.subr.mxu0 0.0
    %277 = vmatpush1.msra.mxu0 %v232
    %278 = vmatprep.subr.mxu0 0.0
    %279 = vmatpush1.msra.mxu0 %v231
    %280 = vmatprep.subr.mxu0 0.0
    %281 = vmatpush1.msra.mxu0 %v230
    %282 = vmatprep.subr.mxu0 0.0
    %283 = vmatpush2.msra.mxu0 0.0
    %284 = vmatprep.subr.mxu0 0.0
    %285 = vmatpush2.msra.mxu0 0.0
    %286 = vmatprep.subr.mxu0 0.0
    %287 = vmatpush2.msra.mxu0 0.0
    %288 = vmatprep.subr.mxu0 0.0
    %289 = vmatpush2.msra.mxu0 0.0
    %290 = vmatprep.subr.mxu0 0.0
    %291 = vmatpush2.msra.mxu0 0.0
    %292 = vmatprep.subr.mxu0 0.0
    %293 = vmatpush2.msra.mxu0 0.0
    %294 = vmatprep.subr.mxu0 0.0
    %295 = vmatpush2.msra.mxu0 0.0
    %296 = vmatprep.subr.mxu0 0.0
    %297 = vmatpush2.msra.mxu0 0.0
    %298 = vmatprep.subr.mxu0 0.0
    %299 = vmatpush2.msra.mxu0 0.0
    %300 = vmatprep.subr.mxu0 0.0
    %301 = vmatpush2.msra.mxu0 0.0
    %302 = vmatprep.subr.mxu0 0.0
    %303 = vmatpush2.msra.mxu0 0.0
    %304 = vmatprep.subr.mxu0 0.0
    %305 = vmatpush2.msra.mxu0 0.0
    %306 = vmatprep.subr.mxu0 0.0
    %307 = vmatpush2.msra.mxu0 0.0
    %308 = vmatprep.subr.mxu0 0.0
    %309 = vmatpush2.msra.mxu0 0.0
    %310 = vmatprep.subr.mxu0 0.0
    %311 = vmatpush2.msra.mxu0 0.0
    %312 = vmatprep.subr.mxu0 0.0
    %313 = vmatpush2.msra.mxu0 0.0
    %314 = vmatprep.mubr.f32.mxu0 0.0
    %315 = vmatmul.mubr.f32.gmra.mxu0 %v229
    %v316 = vpop.f32.mrf.mxu0
    %v317 = vadd.f32 %v249, %v316
    %v318 = vpop.f32.mrf.mxu0
    %319 = vdwg.mxu0
    %vm320 = vcmask 64512
    %321 = vst.msk [vmem:[#allocation7] sm:$0xff] %vm320, %v317
    // Predicated region
    $region30: #{tpu_custom_call.1} parent=1 // pred_check
      _
    $region31: #{tpu_custom_call.1} parent=1 // pred_check_branch
      %323 = sbr.rel (0) target = $region33
    $region32: #{tpu_custom_call.1} parent=1 // pred_region
      %s325 = ssub.s32 128, 128
      %326 = vsyncadd [#allocation4], %s325
      %s328 = sshll.u32 [#allocation7], 4
      %s329 = int_to_ptr.vmem [resolvable:$true] %s328
      %331 = dma.vmem_to_hbm [thread:$0]  %s329, 128, %s5, [#allocation4]
    $region33: #{tpu_custom_call.1} parent=1 // pred_fallthru
      _
    // Predicated region
    $region34: #{tpu_custom_call.1} parent=1 // pred_check
      _
    $region35: #{tpu_custom_call.1} parent=1 // pred_check_branch
      %333 = sbr.rel (0) target = $region37
    $region36: #{tpu_custom_call.1} parent=1 // pred_region
      %334 = dma.done [#allocation4], 128
    $region37: #{tpu_custom_call.1} parent=1 // pred_fallthru
      _
    %335 = vsyncpa [#allocation3], 1
    %336 = vsyncpa [#allocation6], 1
    %337 = vsyncpa [#allocation4], 1

</llo_original>
